<compile_context>
chip_gen: v7x
topology: tpu7x:2x2x1
jax: 0.10.0
libtpu: 0.0.40
codegen_flags: <defaults>
</compile_context>

<pallas_src>
import jax
import jax.numpy as jnp
from jax.experimental import pallas as pl
from jax.experimental.pallas import tpu as pltpu

LANES = 128  # TPU lane width; batch samples packed per reshaped row


def _linear_kernel(x_ref, wb_ref, b_ref, o_ref):
    # x_ref : (SB, IN*128) VMEM -- 128 samples per row, features interleaved
    #                              along lanes (natural HBM order, no transpose).
    # wb_ref: (IN*128, 128) VMEM -- block-diagonal de-interleave weights,
    #                              Wb[IN*j + c, j] = W[0, c]; resident across steps
    #                              (constant index_map -> not re-fetched).
    # b_ref : (1,) SMEM          -- bias scalar.
    # o_ref : (SB, 128) VMEM     -- lane/sublane-dense output slab; element
    #                              [s, j] is batch sample s*128 + j.
    acc = jnp.dot(x_ref[...], wb_ref[...], preferred_element_type=jnp.float32)
    # Single hoisted scalar broadcast for the bias (one VPU add over the slab).
    o_ref[...] = (acc + b_ref[0]).astype(o_ref.dtype)


def linear_forward(x, weight, bias, *, block_rows=2048):
    """Pallas-TPU forward for nn.Linear(2, 1): returns x @ W.T + b, shape (B, 1).

    x: (B, IN) float; weight: (OUT, IN); bias: (OUT,), with OUT == 1.
    block_rows: rows (of 128 samples each) per grid step; must be a multiple of 8.
    """
    B, IN = x.shape
    OUT = weight.shape[0]
    assert weight.shape == (OUT, IN) and bias.shape == (OUT,)
    assert OUT == 1, "Net.fc1 has a single output feature"
    assert block_rows % 8 == 0

    orig_dtype = x.dtype
    x = x.astype(jnp.float32)

    # ---- Layout plumbing (all free reshapes of the contiguous (B, IN) buffer) ----
    R = pl.cdiv(B, LANES)          # rows of 128 samples
    B_pad = R * LANES
    if B_pad != B:                 # pad ragged tail so the reshape is exact
        x = jnp.pad(x, ((0, B_pad - B), (0, 0)))
    x_rows = x.reshape(R, IN * LANES)               # (R, 256) lane-dense, interleaved

    # Block-diagonal de-interleave weight matrix: Wb[IN*j + c, j] = W[0, c].
    w = weight.reshape(IN).astype(jnp.float32)      # (IN,)
    wb = (jnp.eye(LANES, dtype=jnp.float32)[:, None, :]
          * w[None, :, None]).reshape(IN * LANES, LANES)   # (IN*128, 128) ~128 KiB

    b = bias.reshape(1).astype(jnp.float32)         # (1,) SMEM scalar

    # ---- Tiling: big dense row-blocks, cdiv grid (partial last block masked) ----
    SB = R if R <= block_rows else block_rows       # full-dim block for small B
    grid = (pl.cdiv(R, SB),)

    out_rows = pl.pallas_call(
        _linear_kernel,
        out_shape=jax.ShapeDtypeStruct((R, LANES), jnp.float32),
        grid=grid,
        in_specs=[
            pl.BlockSpec((SB, IN * LANES), lambda i: (i, 0)),      # x slab (pipelined)
            pl.BlockSpec((IN * LANES, LANES), lambda i: (0, 0)),   # Wb (resident)
            pl.BlockSpec(memory_space=pltpu.MemorySpace.SMEM),     # bias scalar
        ],
        out_specs=pl.BlockSpec((SB, LANES), lambda i: (i, 0)),
        compiler_params=pltpu.CompilerParams(
            dimension_semantics=("parallel",),       # batch axis: megacore-shardable
            vmem_limit_bytes=32 * 1024 * 1024,       # explicit headroom (v5e default=16MiB)
        ),
    )(x_rows, wb, b)

    # Free reshape; slice only materializes anything in the ragged-B case.
    return out_rows.reshape(B_pad)[:B].reshape(B, OUT).astype(orig_dtype)


if __name__ == "__main__":
    key = jax.random.PRNGKey(0)
    kw, kb, kx1, kx2, kx3 = jax.random.split(key, 5)

    IN, OUT = 2, 1
    bound = 1.0 / (IN ** 0.5)   # mimic nn.Linear's uniform(-1/sqrt(IN), 1/sqrt(IN))
    weight = jax.random.uniform(kw, (OUT, IN), jnp.float32, -bound, bound)
    bias = jax.random.uniform(kb, (OUT,), jnp.float32, -bound, bound)

    def ref_fn(xv):
        # Exact f32 elementwise reference for x @ W.T + b.
        return xv[:, 0:1] * weight[0, 0] + xv[:, 1:2] * weight[0, 1] + bias[0]

    # 1) Small batch (single block, padded ragged tail: B < 128).
    x1 = jax.random.normal(kx1, (8, IN), jnp.float32)
    out1 = jax.block_until_ready(linear_forward(x1, weight, bias))
    assert out1.shape == (8, OUT)
    assert jnp.allclose(out1, ref_fn(x1), atol=1e-4, rtol=1e-4)

    # 2) Multi-row batch with B % 128 != 0 (exercises the padding path).
    x2 = jax.random.normal(kx2, (300, IN), jnp.float32)
    out2 = jax.block_until_ready(linear_forward(x2, weight, bias))
    assert out2.shape == (300, OUT)
    assert jnp.allclose(out2, ref_fn(x2), atol=1e-4, rtol=1e-4)

    # 3) Multi-step pipelined grid (small block_rows override keeps the test tiny).
    x3 = jax.random.normal(kx3, (4096, IN), jnp.float32)
    out3 = jax.block_until_ready(linear_forward(x3, weight, bias, block_rows=8))
    assert out3.shape == (4096, OUT)
    assert jnp.allclose(out3, ref_fn(x3), atol=1e-4, rtol=1e-4)

    print("KERNEL_OK")
</pallas_src>

<mosaic_0001>
module attributes {stable_mosaic.version = 11 : i64} {
  func.func @_linear_kernel(%arg0: i32, %arg1: memref<1x256xf32, #tpu.memory_space<vmem>>, %arg2: memref<256x128xf32, #tpu.memory_space<vmem>>, %arg3: memref<1xf32, #tpu.memory_space<smem>>, %arg4: memref<1x128xf32, #tpu.memory_space<vmem>>) attributes {dimension_semantics = [#tpu.dimension_semantics<parallel>], iteration_bounds = array<i64: 1>, scalar_prefetch = 0 : i64, scratch_operands = 0 : i64, tpu.core_type = #tpu.core_type<tc>, window_params = [{transform_indices = @transform_0, window_bounds = array<i64: 1, 256>}, {pipeline_mode = #tpu.pipeline_mode<synchronous>, transform_indices = @transform_1, window_bounds = array<i64: 256, 128>}, {transform_indices = @transform_2, window_bounds = array<i64: 1>}, {transform_indices = @transform_3, window_bounds = array<i64: 1, 128>}]} {
    %c0 = arith.constant 0 : index
    %c0_0 = arith.constant 0 : index
    %0 = vector.load %arg1[%c0, %c0_0] : memref<1x256xf32, #tpu.memory_space<vmem>>, vector<1x256xf32>
    %c0_1 = arith.constant 0 : index
    %c0_2 = arith.constant 0 : index
    %1 = vector.load %arg2[%c0_1, %c0_2] : memref<256x128xf32, #tpu.memory_space<vmem>>, vector<256x128xf32>
    %cst = arith.constant dense<0.000000e+00> : vector<1x128xf32>
    %2 = tpu.matmul %0, %1, %cst {dimension_numbers = #tpu.dot_dimension_numbers<[1], [0], [0], [1], [0, 0, 1, 1], [], []>} : vector<1x256xf32>, vector<256x128xf32>, vector<1x128xf32> -> vector<1x128xf32>
    %c0_3 = arith.constant 0 : index
    %3 = memref.load %arg3[%c0_3] : memref<1xf32, #tpu.memory_space<smem>>
    %4 = vector.broadcast %3 : f32 to vector<1x128xf32>
    %5 = arith.addf %2, %4 : vector<1x128xf32>
    %c0_4 = arith.constant 0 : index
    %c0_5 = arith.constant 0 : index
    %6 = vector.load %arg4[%c0_4, %c0_5] : memref<1x128xf32, #tpu.memory_space<vmem>>, vector<1x128xf32>
    tpu.vector_store %arg4[%c0_4, %c0_5], %5 {strides = array<i32>} : memref<1x128xf32, #tpu.memory_space<vmem>>, vector<1x128xf32>,
    return
  }
  func.func @transform_0(%arg0: i32) -> (i32, i32) {
    %c0_i32 = arith.constant 0 : i32
    %c0_i32_0 = arith.constant 0 : i32
    return %arg0, %c0_i32 : i32, i32
  }
  func.func @transform_1(%arg0: i32) -> (i32, i32) {
    %c0_i32 = arith.constant 0 : i32
    %c0_i32_0 = arith.constant 0 : i32
    %c0_i32_1 = arith.constant 0 : i32
    return %c0_i32, %c0_i32_0 : i32, i32
  }
  func.func @transform_2(%arg0: i32) -> i32 {
    %c0_i32 = arith.constant 0 : i32
    %c0_i32_0 = arith.constant 0 : i32
    return %c0_i32 : i32
  }
  func.func @transform_3(%arg0: i32) -> (i32, i32) {
    %c0_i32 = arith.constant 0 : i32
    %c0_i32_0 = arith.constant 0 : i32
    return %arg0, %c0_i32 : i32, i32
  }
}

</mosaic_0001>

<llo_original>
// kernel: tpu_custom_call.1
$region0: #{tpu_custom_call.1}
  #allocation0 [shape = 'u32[]', space=smem, size = 0x4, offset = 0x4, fixed_abs, tag = 'smem constant byte address 0x4 - core index']
  #allocation1 [shape = 'u32[144,128]{1,0:T(1,128)}', space=vmem, size = 0x12000, scoped, tag = 'internal scratch']
  #allocation2 [shape = 'f32[1]{0:T(128)S(6)}', space=smem, size = 0x200, scoped, tag = 'scoped memory for tpu_custom_call.1']
  %s0 = inlined_call_operand.vmem [shape: f32[1,256], index: 0, kind: input, shape index: {}]
  %s1 = inlined_call_operand.hbm [shape: f32[256,128], index: 1, kind: input, shape index: {}]
  %s2 = inlined_call_operand.<no memory space> [shape: f32[1], index: 2, kind: input, shape index: {}]
  %s3 = inlined_call_operand.hbm [shape: f32[1,128], index: 3, kind: output, shape index: {}]
  %s4 = sld [smem:[#allocation0]]
  $region26: #{tpu_custom_call.1} parent=0
    _
  %s6 = ssub.s32 1, %s4
  %s7 = scalar_select 0, %s6, %s4
  %8 = sst [smem:[#allocation2]] %s2
  $region1: #{tpu_custom_call.1} parent=0
    #allocation3 [shape = 'u8[131072]{0}', space=vmem, size = 0x20000, scoped, tag = 'input window, operand 1, single buffered']
    #allocation4 [shape = 's32[1]{0}', space=sflag, size = 0x4, scoped, tag = 'scoped memory for tpu_custom_call.1']
    #allocation5 [shape = 's32[1]{0}', space=sflag, size = 0x4, scoped, tag = 'scoped memory for tpu_custom_call.1']
    #allocation6 [shape = 'u8[512]{0}', space=vmem, size = 0x400, scoped, tag = 'output window, operand 0, single buffered']
    %9 = vsyncpa [#allocation4], 0
    %10 = vsyncpa [#allocation5], 0
    // Predicated region
    $region2: #{tpu_custom_call.1} parent=1 // pred_check
      _
    $region3: #{tpu_custom_call.1} parent=1 // pred_check_branch
      %12 = sbr.rel (0) target = $region5
    $region4: #{tpu_custom_call.1} parent=1 // pred_region
      _
    $region5: #{tpu_custom_call.1} parent=1 // pred_fallthru
      _
    // Predicated region
    $region6: #{tpu_custom_call.1} parent=1 // pred_check
      _
    $region7: #{tpu_custom_call.1} parent=1 // pred_check_branch
      %14 = sbr.rel (0) target = $region9
    $region8: #{tpu_custom_call.1} parent=1 // pred_region
      %s16 = ssub.s32 4096, 4096
      %17 = vsyncadd [#allocation4], %s16
      %s18 = sshll.u32 [#allocation3], 4
      %s19 = int_to_ptr.vmem [resolvable:$true] %s18
      %24 = dma.hbm_to_vmem [thread:$0]  %s1, 4096, %s19, [#allocation4], 128, 128, 8
    $region9: #{tpu_custom_call.1} parent=1 // pred_fallthru
      _
    // Predicated region
    $region10: #{tpu_custom_call.1} parent=1 // pred_check
      _
    $region11: #{tpu_custom_call.1} parent=1 // pred_check_branch
      %26 = sbr.rel (0) target = $region13
    $region12: #{tpu_custom_call.1} parent=1 // pred_region
      _
    $region13: #{tpu_custom_call.1} parent=1 // pred_fallthru
      _
    // Predicated region
    $region14: #{tpu_custom_call.1} parent=1 // pred_check
      _
    $region15: #{tpu_custom_call.1} parent=1 // pred_check_branch
      %28 = sbr.rel (0) target = $region17
    $region16: #{tpu_custom_call.1} parent=1 // pred_region
      %29 = dma.done [#allocation4], 4096
    $region17: #{tpu_custom_call.1} parent=1 // pred_fallthru
      _
    %v30 = vld [vmem:[%s0] sm:$0x3]
    %v31 = vld [vmem:[#allocation3] sm:$0xff]
    %v32 = vld [vmem:[#allocation3 + $0x8] sm:$0xff]
    %v33 = vld [vmem:[#allocation3 + $0x10] sm:$0xff]
    %v34 = vld [vmem:[#allocation3 + $0x18] sm:$0xff]
    %v35 = vld [vmem:[#allocation3 + $0x20] sm:$0xff]
    %v36 = vld [vmem:[#allocation3 + $0x28] sm:$0xff]
    %v37 = vld [vmem:[#allocation3 + $0x30] sm:$0xff]
    %v38 = vld [vmem:[#allocation3 + $0x38] sm:$0xff]
    %v39 = vld [vmem:[#allocation3 + $0x40] sm:$0xff]
    %v40 = vld [vmem:[#allocation3 + $0x48] sm:$0xff]
    %v41 = vld [vmem:[#allocation3 + $0x50] sm:$0xff]
    %v42 = vld [vmem:[#allocation3 + $0x58] sm:$0xff]
    %v43 = vld [vmem:[#allocation3 + $0x60] sm:$0xff]
    %v44 = vld [vmem:[#allocation3 + $0x68] sm:$0xff]
    %v45 = vld [vmem:[#allocation3 + $0x70] sm:$0xff]
    %v46 = vld [vmem:[#allocation3 + $0x78] sm:$0xff]
    %v47 = vld [vmem:[#allocation3 + $0x80] sm:$0xff]
    %v48 = vld [vmem:[#allocation3 + $0x88] sm:$0xff]
    %v49 = vld [vmem:[#allocation3 + $0x90] sm:$0xff]
    %v50 = vld [vmem:[#allocation3 + $0x98] sm:$0xff]
    %v51 = vld [vmem:[#allocation3 + $0xa0] sm:$0xff]
    %v52 = vld [vmem:[#allocation3 + $0xa8] sm:$0xff]
    %v53 = vld [vmem:[#allocation3 + $0xb0] sm:$0xff]
    %v54 = vld [vmem:[#allocation3 + $0xb8] sm:$0xff]
    %v55 = vld [vmem:[#allocation3 + $0xc0] sm:$0xff]
    %v56 = vld [vmem:[#allocation3 + $0xc8] sm:$0xff]
    %v57 = vld [vmem:[#allocation3 + $0xd0] sm:$0xff]
    %v58 = vld [vmem:[#allocation3 + $0xd8] sm:$0xff]
    %v59 = vld [vmem:[#allocation3 + $0xe0] sm:$0xff]
    %v60 = vld [vmem:[#allocation3 + $0xe8] sm:$0xff]
    %v61 = vld [vmem:[#allocation3 + $0xf0] sm:$0xff]
    %v62 = vld [vmem:[#allocation3 + $0xf8] sm:$0xff]
    %s63 = sld [smem:[#allocation2]]
    %v64 = vstv %s63
    %v66 = vlaneseq
    %v67 = vshrl.u32 %v66, 7
    %v68 = vsub.s32 0, %v67
    %v69 = vrot.slane %v30, %v68
    %v70 = vlaneseq
    %v71 = vshrl.u32 %v70, 7
    %v72 = vsub.s32 1, %v71
    %v73 = vrot.slane %v30, %v72
    %76 = vmatprep.subr.mxu0 0.0
    %77 = vmatpush1.msra.mxu0 %v31
    %78 = vmatprep.subr.mxu0 0.0
    %79 = vmatpush1.msra.mxu0 %v32
    %80 = vmatprep.subr.mxu0 0.0
    %81 = vmatpush1.msra.mxu0 %v33
    %82 = vmatprep.subr.mxu0 0.0
    %83 = vmatpush1.msra.mxu0 %v34
    %84 = vmatprep.subr.mxu0 0.0
    %85 = vmatpush1.msra.mxu0 %v35
    %86 = vmatprep.subr.mxu0 0.0
    %87 = vmatpush1.msra.mxu0 %v36
    %88 = vmatprep.subr.mxu0 0.0
    %89 = vmatpush1.msra.mxu0 %v37
    %90 = vmatprep.subr.mxu0 0.0
    %91 = vmatpush1.msra.mxu0 %v38
    %92 = vmatprep.subr.mxu0 0.0
    %93 = vmatpush1.msra.mxu0 %v39
    %94 = vmatprep.subr.mxu0 0.0
    %95 = vmatpush1.msra.mxu0 %v40
    %96 = vmatprep.subr.mxu0 0.0
    %97 = vmatpush1.msra.mxu0 %v41
    %98 = vmatprep.subr.mxu0 0.0
    %99 = vmatpush1.msra.mxu0 %v42
    %100 = vmatprep.subr.mxu0 0.0
    %101 = vmatpush1.msra.mxu0 %v43
    %102 = vmatprep.subr.mxu0 0.0
    %103 = vmatpush1.msra.mxu0 %v44
    %104 = vmatprep.subr.mxu0 0.0
    %105 = vmatpush1.msra.mxu0 %v45
    %106 = vmatprep.subr.mxu0 0.0
    %107 = vmatpush1.msra.mxu0 %v46
    %108 = vmatprep.subr.mxu0 0.0
    %109 = vmatpush1.msra.mxu0 %v47
    %110 = vmatprep.subr.mxu0 0.0
    %111 = vmatpush1.msra.mxu0 %v48
    %112 = vmatprep.subr.mxu0 0.0
    %113 = vmatpush1.msra.mxu0 %v49
    %114 = vmatprep.subr.mxu0 0.0
    %115 = vmatpush1.msra.mxu0 %v50
    %116 = vmatprep.subr.mxu0 0.0
    %117 = vmatpush1.msra.mxu0 %v51
    %118 = vmatprep.subr.mxu0 0.0
    %119 = vmatpush1.msra.mxu0 %v52
    %120 = vmatprep.subr.mxu0 0.0
    %121 = vmatpush1.msra.mxu0 %v53
    %122 = vmatprep.subr.mxu0 0.0
    %123 = vmatpush1.msra.mxu0 %v54
    %124 = vmatprep.subr.mxu0 0.0
    %125 = vmatpush1.msra.mxu0 %v55
    %126 = vmatprep.subr.mxu0 0.0
    %127 = vmatpush1.msra.mxu0 %v56
    %128 = vmatprep.subr.mxu0 0.0
    %129 = vmatpush1.msra.mxu0 %v57
    %130 = vmatprep.subr.mxu0 0.0
    %131 = vmatpush1.msra.mxu0 %v58
    %132 = vmatprep.subr.mxu0 0.0
    %133 = vmatpush1.msra.mxu0 %v59
    %134 = vmatprep.subr.mxu0 0.0
    %135 = vmatpush1.msra.mxu0 %v60
    %136 = vmatprep.subr.mxu0 0.0
    %137 = vmatpush1.msra.mxu0 %v61
    %138 = vmatprep.subr.mxu0 0.0
    %139 = vmatpush1.msra.mxu0 %v62
    %140 = vmatprep.mubr.f32.mxu0 %v73
    %141 = vmatmul.mubr.f32.gmra.mrb[0].mxu0 %v69
    %v142 = vpop.f32.mrb[0].mxu0
    %v143 = vadd.f32 %v64, %v142
    %v144 = vpop.f32.mrb[0].mxu0
    %145 = vdwg.mxu0
    %146 = vst [vmem:[#allocation6] sm:$0x1] %v143
    // Predicated region
    $region18: #{tpu_custom_call.1} parent=1 // pred_check
      _
    $region19: #{tpu_custom_call.1} parent=1 // pred_check_branch
      %148 = sbr.rel (0) target = $region21
    $region20: #{tpu_custom_call.1} parent=1 // pred_region
      %s150 = ssub.s32 16, 16
      %151 = vsyncadd [#allocation5], %s150
      %s153 = sshll.u32 [#allocation6], 4
      %s154 = int_to_ptr.vmem [resolvable:$true] %s153
      %156 = dma.vmem_to_hbm [thread:$0]  %s154, 16, %s3, [#allocation5]
    $region21: #{tpu_custom_call.1} parent=1 // pred_fallthru
      _
    // Predicated region
    $region22: #{tpu_custom_call.1} parent=1 // pred_check
      _
    $region23: #{tpu_custom_call.1} parent=1 // pred_check_branch
      %158 = sbr.rel (0) target = $region25
    $region24: #{tpu_custom_call.1} parent=1 // pred_region
      %159 = dma.done [#allocation5], 16
    $region25: #{tpu_custom_call.1} parent=1 // pred_fallthru
      _
    %160 = vsyncpa [#allocation4], 1
    %161 = vsyncpa [#allocation5], 1

</llo_original>
